<compile_context>
chip_gen: v6e
topology: v6e:2x2x1
jax: 0.10.0
libtpu: 0.0.40
codegen_flags: <defaults>
</compile_context>

<pallas_src>
import math

import jax
import jax.numpy as jnp
from jax import lax
from jax.experimental import pallas as pl
from jax.experimental.pallas import tpu as pltpu


def _discriminator_kernel(w_ref, s_ref, f_ref, o_ref):
    w = w_ref[...].astype(jnp.float32)          # (h, h)
    s = s_ref[...].astype(jnp.float32)          # (1, h)   summary as a row
    f = f_ref[...].astype(jnp.float32)          # (tn, h)  tile of features
    # ws = (W @ summary)^T  -> (1, h)   (contract last dims: s @ W^T)
    ws = lax.dot_general(s, w, (((1,), (1,)), ((), ())),
                         preferred_element_type=jnp.float32)
    # out = (features @ (W @ summary))^T -> (1, tn)  (contract last dims)
    out = lax.dot_general(ws, f, (((1,), (1,)), ((), ())),
                          preferred_element_type=jnp.float32)
    o_ref[...] = out.astype(o_ref.dtype)


def discriminator_pallas(features, weight, summary, *, tile_n=512):
    """Pallas-backed equivalent of Discriminator.forward: features @ (W @ summary)."""
    n, h = features.shape
    assert weight.shape == (h, h)
    f32 = jnp.asarray(features, jnp.float32)
    w32 = jnp.asarray(weight, jnp.float32)
    s_row = jnp.asarray(summary, jnp.float32).reshape(1, h)

    tn = n if n <= tile_n else tile_n
    grid = (pl.cdiv(n, tn),)

    out = pl.pallas_call(
        _discriminator_kernel,
        out_shape=jax.ShapeDtypeStruct((1, n), jnp.float32),
        grid=grid,
        in_specs=[
            pl.BlockSpec((h, h), lambda i: (0, 0)),      # weight   (resident)
            pl.BlockSpec((1, h), lambda i: (0, 0)),      # summary  (resident)
            pl.BlockSpec((tn, h), lambda i: (i, 0)),     # features tile
        ],
        out_specs=pl.BlockSpec((1, tn), lambda i: (0, i)),   # lane-dense (1, n)
        compiler_params=pltpu.CompilerParams(
            dimension_semantics=("parallel",)),
    )(w32, s_row, f32)
    return out.reshape(n)


class Discriminator:
    """JAX/Pallas port of the GIC Discriminator module (forward only)."""

    def __init__(self, n_hidden, key):
        # reset_parameters(): uniform(-1/sqrt(n_hidden), 1/sqrt(n_hidden))
        bound = 1.0 / math.sqrt(n_hidden)
        self.weight = jax.random.uniform(
            key, (n_hidden, n_hidden), minval=-bound, maxval=bound,
            dtype=jnp.float32)

    def forward(self, features, summary):
        return discriminator_pallas(features, self.weight, summary)


if __name__ == "__main__":
    key = jax.random.PRNGKey(0)
    k_w, k_f = jax.random.split(key)

    n_nodes, n_hidden = 64, 32
    model = Discriminator(n_hidden, k_w)
    features = jax.random.normal(k_f, (n_nodes, n_hidden), dtype=jnp.float32)
    # summary as used in GIC/DGI: sigmoid of the mean node embedding -> (h,)
    summary = jax.nn.sigmoid(features.mean(axis=0))

    out = model.forward(features, summary)
    jax.block_until_ready(out)

    ref = features @ (model.weight @ summary)
    assert out.shape == (n_nodes,)
    assert jnp.allclose(out, ref, atol=1e-4, rtol=1e-4)
    print("KERNEL_OK")
</pallas_src>

<mosaic_0001>
module attributes {stable_mosaic.version = 11 : i64} {
  func.func @_discriminator_kernel(%arg0: i32, %arg1: memref<32x32xf32, #tpu.memory_space<vmem>>, %arg2: memref<1x32xf32, #tpu.memory_space<vmem>>, %arg3: memref<64x32xf32, #tpu.memory_space<vmem>>, %arg4: memref<1x64xf32, #tpu.memory_space<vmem>>) attributes {dimension_semantics = [#tpu.dimension_semantics<parallel>], iteration_bounds = array<i64: 1>, scalar_prefetch = 0 : i64, scratch_operands = 0 : i64, tpu.core_type = #tpu.core_type<tc>, window_params = [{pipeline_mode = #tpu.pipeline_mode<synchronous>, transform_indices = @transform_0, window_bounds = array<i64: 32, 32>}, {pipeline_mode = #tpu.pipeline_mode<synchronous>, transform_indices = @transform_1, window_bounds = array<i64: 1, 32>}, {transform_indices = @transform_2, window_bounds = array<i64: 64, 32>}, {transform_indices = @transform_3, window_bounds = array<i64: 1, 64>}]} {
    %c0 = arith.constant 0 : index
    %c0_0 = arith.constant 0 : index
    %0 = vector.load %arg1[%c0, %c0_0] : memref<32x32xf32, #tpu.memory_space<vmem>>, vector<32x32xf32>
    %c0_1 = arith.constant 0 : index
    %c0_2 = arith.constant 0 : index
    %1 = vector.load %arg2[%c0_1, %c0_2] : memref<1x32xf32, #tpu.memory_space<vmem>>, vector<1x32xf32>
    %c0_3 = arith.constant 0 : index
    %c0_4 = arith.constant 0 : index
    %2 = vector.load %arg3[%c0_3, %c0_4] : memref<64x32xf32, #tpu.memory_space<vmem>>, vector<64x32xf32>
    %cst = arith.constant dense<0.000000e+00> : vector<1x32xf32>
    %3 = tpu.matmul %1, %0, %cst {dimension_numbers = #tpu.dot_dimension_numbers<[1], [1], [0], [0], [0, 0, 1, 0], [], []>} : vector<1x32xf32>, vector<32x32xf32>, vector<1x32xf32> -> vector<1x32xf32>
    %cst_5 = arith.constant dense<0.000000e+00> : vector<1x64xf32>
    %4 = tpu.matmul %3, %2, %cst_5 {dimension_numbers = #tpu.dot_dimension_numbers<[1], [1], [0], [0], [0, 0, 1, 0], [], []>} : vector<1x32xf32>, vector<64x32xf32>, vector<1x64xf32> -> vector<1x64xf32>
    %c0_6 = arith.constant 0 : index
    %c0_7 = arith.constant 0 : index
    %5 = vector.load %arg4[%c0_6, %c0_7] : memref<1x64xf32, #tpu.memory_space<vmem>>, vector<1x64xf32>
    tpu.vector_store %arg4[%c0_6, %c0_7], %4 {strides = array<i32>} : memref<1x64xf32, #tpu.memory_space<vmem>>, vector<1x64xf32>,
    return
  }
  func.func @transform_0(%arg0: i32) -> (i32, i32) {
    %c0_i32 = arith.constant 0 : i32
    %c0_i32_0 = arith.constant 0 : i32
    %c0_i32_1 = arith.constant 0 : i32
    return %c0_i32, %c0_i32_0 : i32, i32
  }
  func.func @transform_1(%arg0: i32) -> (i32, i32) {
    %c0_i32 = arith.constant 0 : i32
    %c0_i32_0 = arith.constant 0 : i32
    %c0_i32_1 = arith.constant 0 : i32
    return %c0_i32, %c0_i32_0 : i32, i32
  }
  func.func @transform_2(%arg0: i32) -> (i32, i32) {
    %c0_i32 = arith.constant 0 : i32
    %c0_i32_0 = arith.constant 0 : i32
    return %arg0, %c0_i32 : i32, i32
  }
  func.func @transform_3(%arg0: i32) -> (i32, i32) {
    %c0_i32 = arith.constant 0 : i32
    %c0_i32_0 = arith.constant 0 : i32
    return %c0_i32, %arg0 : i32, i32
  }
}

</mosaic_0001>

<llo_original>
// kernel: tpu_custom_call.1
$region0: #{tpu_custom_call.1}
  #allocation0 [shape = 'u32[]', space=smem, size = 0x4, offset = 0x4, fixed_abs, tag = 'smem constant byte address 0x4 - core index']
  #allocation1 [shape = 'u32[144,128]{1,0:T(1,128)}', space=vmem, size = 0x12000, scoped, tag = 'internal scratch']
  %s0 = inlined_call_operand.vmem [shape: f32[32,32], index: 0, kind: input, shape index: {}]
  %s1 = inlined_call_operand.vmem [shape: f32[1,32], index: 1, kind: input, shape index: {}]
  %s2 = inlined_call_operand.vmem [shape: f32[64,32], index: 2, kind: input, shape index: {}]
  %s3 = inlined_call_operand.hbm [shape: f32[1,64], index: 3, kind: output, shape index: {}]
  %s4 = sld [smem:[#allocation0]]
  $region22: #{tpu_custom_call.1} parent=0
    _
  %s6 = ssub.s32 1, %s4
  %s7 = scalar_select 0, %s6, %s4
  $region1: #{tpu_custom_call.1} parent=0
    #allocation2 [shape = 'u8[512]{0}', space=vmem, size = 0x400, scoped, tag = 'output window, operand 0, single buffered']
    #allocation3 [shape = 's32[1]{0}', space=sflag, size = 0x4, scoped, tag = 'scoped memory for tpu_custom_call.1']
    %8 = vsyncpa [#allocation3], 0
    // Predicated region
    $region2: #{tpu_custom_call.1} parent=1 // pred_check
      _
    $region3: #{tpu_custom_call.1} parent=1 // pred_check_branch
      %10 = sbr.rel (0) target = $region5
    $region4: #{tpu_custom_call.1} parent=1 // pred_region
      _
    $region5: #{tpu_custom_call.1} parent=1 // pred_fallthru
      _
    // Predicated region
    $region6: #{tpu_custom_call.1} parent=1 // pred_check
      _
    $region7: #{tpu_custom_call.1} parent=1 // pred_check_branch
      %12 = sbr.rel (0) target = $region9
    $region8: #{tpu_custom_call.1} parent=1 // pred_region
      _
    $region9: #{tpu_custom_call.1} parent=1 // pred_fallthru
      _
    // Predicated region
    $region10: #{tpu_custom_call.1} parent=1 // pred_check
      _
    $region11: #{tpu_custom_call.1} parent=1 // pred_check_branch
      %14 = sbr.rel (0) target = $region13
    $region12: #{tpu_custom_call.1} parent=1 // pred_region
      _
    $region13: #{tpu_custom_call.1} parent=1 // pred_fallthru
      _
    %v15 = vld [vmem:[%s0] sm:$0xff]
    %v16 = vld [vmem:[%s0 + $0x8] sm:$0xff]
    %v17 = vld [vmem:[%s0 + $0x10] sm:$0xff]
    %v18 = vld [vmem:[%s0 + $0x18] sm:$0xff]
    %v19 = vld [vmem:[%s1] sm:$0x1]
    %v20 = vld [vmem:[%s2] sm:$0xff]
    %v21 = vld [vmem:[%s2 + $0x8] sm:$0xff]
    %v22 = vld [vmem:[%s2 + $0x10] sm:$0xff]
    %v23 = vld [vmem:[%s2 + $0x18] sm:$0xff]
    %v24 = vld [vmem:[%s2 + $0x20] sm:$0xff]
    %v25 = vld [vmem:[%s2 + $0x28] sm:$0xff]
    %v26 = vld [vmem:[%s2 + $0x30] sm:$0xff]
    %v27 = vld [vmem:[%s2 + $0x38] sm:$0xff]
    %vm28 = vcmask 261120
    %v30 = vsel %vm28, %v19, 0
    %v33 = vsel %vm28, %v15, 0
    %v36 = vsel %vm28, %v16, 0
    %v39 = vsel %vm28, %v17, 0
    %v42 = vsel %vm28, %v18, 0
    %44 = vmatprep.subr.mxu0 0.0
    %45 = vmatpush1.xpose.msra.mxu0 0.0
    %46 = vmatprep.subr.mxu0 0.0
    %47 = vmatpush1.xpose.msra.mxu0 0.0
    %48 = vmatprep.subr.mxu0 0.0
    %49 = vmatpush1.xpose.msra.mxu0 0.0
    %50 = vmatprep.subr.mxu0 0.0
    %51 = vmatpush1.xpose.msra.mxu0 0.0
    %52 = vmatprep.subr.mxu0 0.0
    %53 = vmatpush1.xpose.msra.mxu0 0.0
    %54 = vmatprep.subr.mxu0 0.0
    %55 = vmatpush1.xpose.msra.mxu0 0.0
    %56 = vmatprep.subr.mxu0 0.0
    %57 = vmatpush1.xpose.msra.mxu0 0.0
    %58 = vmatprep.subr.mxu0 0.0
    %59 = vmatpush1.xpose.msra.mxu0 0.0
    %60 = vmatprep.subr.mxu0 0.0
    %61 = vmatpush1.xpose.msra.mxu0 0.0
    %62 = vmatprep.subr.mxu0 0.0
    %63 = vmatpush1.xpose.msra.mxu0 0.0
    %64 = vmatprep.subr.mxu0 0.0
    %65 = vmatpush1.xpose.msra.mxu0 0.0
    %66 = vmatprep.subr.mxu0 0.0
    %67 = vmatpush1.xpose.msra.mxu0 0.0
    %68 = vmatprep.subr.mxu0 0.0
    %69 = vmatpush1.xpose.msra.mxu0 %v42
    %70 = vmatprep.subr.mxu0 0.0
    %71 = vmatpush1.xpose.msra.mxu0 %v39
    %72 = vmatprep.subr.mxu0 0.0
    %73 = vmatpush1.xpose.msra.mxu0 %v36
    %74 = vmatprep.subr.mxu0 0.0
    %75 = vmatpush1.xpose.msra.mxu0 %v33
    %76 = vmatprep.subr.mxu0 0.0
    %77 = vmatpush2.xpose.msra.mxu0 0.0
    %78 = vmatprep.subr.mxu0 0.0
    %79 = vmatpush2.xpose.msra.mxu0 0.0
    %80 = vmatprep.subr.mxu0 0.0
    %81 = vmatpush2.xpose.msra.mxu0 0.0
    %82 = vmatprep.subr.mxu0 0.0
    %83 = vmatpush2.xpose.msra.mxu0 0.0
    %84 = vmatprep.subr.mxu0 0.0
    %85 = vmatpush2.xpose.msra.mxu0 0.0
    %86 = vmatprep.subr.mxu0 0.0
    %87 = vmatpush2.xpose.msra.mxu0 0.0
    %88 = vmatprep.subr.mxu0 0.0
    %89 = vmatpush2.xpose.msra.mxu0 0.0
    %90 = vmatprep.subr.mxu0 0.0
    %91 = vmatpush2.xpose.msra.mxu0 0.0
    %92 = vmatprep.subr.mxu0 0.0
    %93 = vmatpush2.xpose.msra.mxu0 0.0
    %94 = vmatprep.subr.mxu0 0.0
    %95 = vmatpush2.xpose.msra.mxu0 0.0
    %96 = vmatprep.subr.mxu0 0.0
    %97 = vmatpush2.xpose.msra.mxu0 0.0
    %98 = vmatprep.subr.mxu0 0.0
    %99 = vmatpush2.xpose.msra.mxu0 0.0
    %100 = vmatprep.subr.mxu0 0.0
    %101 = vmatpush2.xpose.msra.mxu0 0.0
    %102 = vmatprep.subr.mxu0 0.0
    %103 = vmatpush2.xpose.msra.mxu0 0.0
    %104 = vmatprep.subr.mxu0 0.0
    %105 = vmatpush2.xpose.msra.mxu0 0.0
    %106 = vmatprep.subr.mxu0 0.0
    %107 = vmatpush2.xpose.msra.mxu0 0.0
    %108 = vmatprep.mubr.f32.mxu0 0.0
    %109 = vmatmul.mubr.f32.gmra.mxu0 %v30
    %v110 = vpop.f32.mrf.mxu0
    %v111 = vadd.f32 0.0, %v110
    %v112 = vpop.f32.mrf.mxu0
    %113 = vdwg.mxu0
    %v115 = vsel %vm28, %v111, 0
    %v118 = vsel %vm28, %v20, 0
    %v121 = vsel %vm28, %v21, 0
    %v124 = vsel %vm28, %v22, 0
    %v127 = vsel %vm28, %v23, 0
    %v130 = vsel %vm28, %v24, 0
    %v133 = vsel %vm28, %v25, 0
    %v136 = vsel %vm28, %v26, 0
    %v139 = vsel %vm28, %v27, 0
    %141 = vmatprep.subr.mxu0 0.0
    %142 = vmatpush1.xpose.msra.mxu0 0.0
    %143 = vmatprep.subr.mxu0 0.0
    %144 = vmatpush1.xpose.msra.mxu0 0.0
    %145 = vmatprep.subr.mxu0 0.0
    %146 = vmatpush1.xpose.msra.mxu0 0.0
    %147 = vmatprep.subr.mxu0 0.0
    %148 = vmatpush1.xpose.msra.mxu0 0.0
    %149 = vmatprep.subr.mxu0 0.0
    %150 = vmatpush1.xpose.msra.mxu0 0.0
    %151 = vmatprep.subr.mxu0 0.0
    %152 = vmatpush1.xpose.msra.mxu0 0.0
    %153 = vmatprep.subr.mxu0 0.0
    %154 = vmatpush1.xpose.msra.mxu0 0.0
    %155 = vmatprep.subr.mxu0 0.0
    %156 = vmatpush1.xpose.msra.mxu0 0.0
    %157 = vmatprep.subr.mxu0 0.0
    %158 = vmatpush1.xpose.msra.mxu0 %v139
    %159 = vmatprep.subr.mxu0 0.0
    %160 = vmatpush1.xpose.msra.mxu0 %v136
    %161 = vmatprep.subr.mxu0 0.0
    %162 = vmatpush1.xpose.msra.mxu0 %v133
    %163 = vmatprep.subr.mxu0 0.0
    %164 = vmatpush1.xpose.msra.mxu0 %v130
    %165 = vmatprep.subr.mxu0 0.0
    %166 = vmatpush1.xpose.msra.mxu0 %v127
    %167 = vmatprep.subr.mxu0 0.0
    %168 = vmatpush1.xpose.msra.mxu0 %v124
    %169 = vmatprep.subr.mxu0 0.0
    %170 = vmatpush1.xpose.msra.mxu0 %v121
    %171 = vmatprep.subr.mxu0 0.0
    %172 = vmatpush1.xpose.msra.mxu0 %v118
    %173 = vmatprep.subr.mxu0 0.0
    %174 = vmatpush2.xpose.msra.mxu0 0.0
    %175 = vmatprep.subr.mxu0 0.0
    %176 = vmatpush2.xpose.msra.mxu0 0.0
    %177 = vmatprep.subr.mxu0 0.0
    %178 = vmatpush2.xpose.msra.mxu0 0.0
    %179 = vmatprep.subr.mxu0 0.0
    %180 = vmatpush2.xpose.msra.mxu0 0.0
    %181 = vmatprep.subr.mxu0 0.0
    %182 = vmatpush2.xpose.msra.mxu0 0.0
    %183 = vmatprep.subr.mxu0 0.0
    %184 = vmatpush2.xpose.msra.mxu0 0.0
    %185 = vmatprep.subr.mxu0 0.0
    %186 = vmatpush2.xpose.msra.mxu0 0.0
    %187 = vmatprep.subr.mxu0 0.0
    %188 = vmatpush2.xpose.msra.mxu0 0.0
    %189 = vmatprep.subr.mxu0 0.0
    %190 = vmatpush2.xpose.msra.mxu0 0.0
    %191 = vmatprep.subr.mxu0 0.0
    %192 = vmatpush2.xpose.msra.mxu0 0.0
    %193 = vmatprep.subr.mxu0 0.0
    %194 = vmatpush2.xpose.msra.mxu0 0.0
    %195 = vmatprep.subr.mxu0 0.0
    %196 = vmatpush2.xpose.msra.mxu0 0.0
    %197 = vmatprep.subr.mxu0 0.0
    %198 = vmatpush2.xpose.msra.mxu0 0.0
    %199 = vmatprep.subr.mxu0 0.0
    %200 = vmatpush2.xpose.msra.mxu0 0.0
    %201 = vmatprep.subr.mxu0 0.0
    %202 = vmatpush2.xpose.msra.mxu0 0.0
    %203 = vmatprep.subr.mxu0 0.0
    %204 = vmatpush2.xpose.msra.mxu0 0.0
    %205 = vmatprep.mubr.f32.mxu0 0.0
    %206 = vmatmul.mubr.f32.gmra.mxu0 %v115
    %v207 = vpop.f32.mrf.mxu0
    %v208 = vadd.f32 0.0, %v207
    %v209 = vpop.f32.mrf.mxu0
    %210 = vdwg.mxu0
    %vm211 = vcmask 516096
    %212 = vst.msk [vmem:[#allocation2] sm:$0x1] %vm211, %v208
    // Predicated region
    $region14: #{tpu_custom_call.1} parent=1 // pred_check
      _
    $region15: #{tpu_custom_call.1} parent=1 // pred_check_branch
      %214 = sbr.rel (0) target = $region17
    $region16: #{tpu_custom_call.1} parent=1 // pred_region
      %s216 = ssub.s32 16, 16
      %217 = vsyncadd [#allocation3], %s216
      %s219 = sshll.u32 [#allocation2], 4
      %s220 = int_to_ptr.vmem [resolvable:$true] %s219
      %222 = dma.vmem_to_hbm [thread:$0]  %s220, 16, %s3, [#allocation3]
    $region17: #{tpu_custom_call.1} parent=1 // pred_fallthru
      _
    // Predicated region
    $region18: #{tpu_custom_call.1} parent=1 // pred_check
      _
    $region19: #{tpu_custom_call.1} parent=1 // pred_check_branch
      %224 = sbr.rel (0) target = $region21
    $region20: #{tpu_custom_call.1} parent=1 // pred_region
      %225 = dma.done [#allocation3], 16
    $region21: #{tpu_custom_call.1} parent=1 // pred_fallthru
      _
    %226 = vsyncpa [#allocation3], 1

</llo_original>
